<compile_context>
chip_gen: v7x
topology: tpu7x:2x2x1
jax: 0.10.0
libtpu: 0.0.40
codegen_flags: <defaults>
</compile_context>

<pallas_src>
import math

import jax
import jax.numpy as jnp
from jax.experimental import pallas as pl
from jax.experimental.pallas import tpu as pltpu


def _round_up(x, m):
    return (x + m - 1) // m * m


def _timestep_embedding_kernel(t_ref, fmat_ref, phase_ref,
                               w1_ref, b1_ref, w2_ref, b2_ref, o_ref):
    # Build the lane-folded sinusoid argument:
    #   arg[r, f*E + j] = t[r, f] * freqs_full[j]
    # via one tiny MXU matmul against the (fold, fold*E) scatter matrix.
    tf = t_ref[...]
    if tf.shape[-1] == 1 and fmat_ref.shape[0] == 1:        # fold == 1 fallback
        arg = tf * fmat_ref[...]
    else:
        arg = jnp.dot(tf, fmat_ref[...], preferred_element_type=jnp.float32)

    # [sin | cos] in one pass via the phase trick sin(x + pi/2) == cos(x).
    emb = jnp.sin(arg + phase_ref[...])                      # (tbr, fold*E), lane-dense

    # Linear 1 (+ bias) against the block-diagonal weight, then LeakyReLU(0.2).
    h = jnp.dot(emb, w1_ref[...], preferred_element_type=jnp.float32) + b1_ref[...]
    h = jnp.where(h >= 0, h, 0.2 * h)                        # (tbr, fold*H)

    # Linear 2 (+ bias); lane-dense store at the requested output dtype.
    out = jnp.dot(h, w2_ref[...], preferred_element_type=jnp.float32) + b2_ref[...]
    o_ref[...] = out.astype(o_ref.dtype)                     # (tbr, fold*O)


def timestep_embedding(temp, w1, b1, w2, b2, embedding_dim, *,
                       tile_b=16384, out_dtype=jnp.float32):
    """temp: [B] float timesteps.  w1: [E, H], b1: [H], w2: [H, O], b2: [O]
    (weights stored [in, out], i.e. transposed vs. nn.Linear.weight).
    Returns [B, O] in out_dtype (float32 by default)."""
    assert embedding_dim % 2 == 0 and embedding_dim >= 4, "even embedding_dim >= 4 only"
    # TODO(synk): odd embedding_dim zero-pad branch of get_timestep_embedding is
    #             not implemented (even dims only).

    B = temp.shape[0]
    E = embedding_dim
    half = E // 2
    H = w1.shape[1]
    O = w2.shape[1]

    # Lane-folding factor: pack `fold` consecutive batch rows into the 128-lane
    # dimension (O=32 -> fold=4 -> out rows are exactly 128 lanes wide).
    fold = 1
    if O < 128 and 128 % O == 0:
        fold = 128 // O
        # Keep the replicated block-diagonal weights small (VMEM-resident).
        while fold > 1 and (fold * E) * (fold * H) * 4 > (2 << 20):
            fold //= 2

    # Batch tiling: large tiles amortize the ~0.35 us per-grid-step overhead; keep
    # >= 2 grid steps when the batch allows it so ("parallel",) can shard across
    # the two v7x TensorCores.
    tb_align = 8 * fold
    if B > tile_b:
        n_tiles = pl.cdiv(B, tile_b)
    elif B >= 4 * tb_align:
        n_tiles = 2
    else:
        n_tiles = 1
    tb = _round_up(pl.cdiv(B, n_tiles), tb_align)
    Bp = _round_up(B, tb)
    tbr = tb // fold
    grid = (Bp // tb,)

    t = temp.astype(jnp.float32).reshape(B)
    if Bp != B:
        t = jnp.pad(t, (0, Bp - B))
    t_folded = t.reshape(Bp // fold, fold)

    # Frequencies (DDGAN get_timestep_embedding: exp(-log(1e4)*k/(half-1)),
    # concatenated [sin | cos]) and the phase trick, scattered into the folded layout.
    freqs = jnp.exp(jnp.arange(half, dtype=jnp.float32)
                    * (-math.log(10000.0) / (half - 1)))
    freqs_full = jnp.concatenate([freqs, freqs]).reshape(1, E)
    phase = jnp.concatenate([jnp.zeros((half,), jnp.float32),
                             jnp.full((half,), jnp.pi / 2, jnp.float32)]).reshape(1, E)
    eye = jnp.eye(fold, dtype=jnp.float32)
    fmat = jnp.kron(eye, freqs_full)                      # (fold, fold*E)
    phase_f = jnp.tile(phase, (1, fold))                  # (1, fold*E)

    # Block-diagonal weights: identical math per fold group, fully lane-dense.
    w1f = jnp.kron(eye, w1.astype(jnp.float32))           # (fold*E, fold*H)
    w2f = jnp.kron(eye, w2.astype(jnp.float32))           # (fold*H, fold*O)
    b1f = jnp.tile(b1.astype(jnp.float32).reshape(1, H), (1, fold))
    b2f = jnp.tile(b2.astype(jnp.float32).reshape(1, O), (1, fold))

    def const(shape):
        n = len(shape)
        return pl.BlockSpec(shape, lambda i, n=n: (0,) * n)

    out_bytes = jnp.dtype(out_dtype).itemsize
    resident_elems = (fold * fold * (E * H + H * O + E)
                      + fold * (E + H + O))

    out = pl.pallas_call(
        _timestep_embedding_kernel,
        out_shape=jax.ShapeDtypeStruct((Bp // fold, fold * O), out_dtype),
        grid=grid,
        in_specs=[
            pl.BlockSpec((tbr, fold), lambda i: (i, 0)),   # timesteps (batch-tiled)
            const((fold, fold * E)),                       # frequency scatter matrix
            const((1, fold * E)),                          # phase
            const((fold * E, fold * H)),                   # W1 (block-diagonal)
            const((1, fold * H)),                          # b1
            const((fold * H, fold * O)),                   # W2 (block-diagonal)
            const((1, fold * O)),                          # b2
        ],
        out_specs=pl.BlockSpec((tbr, fold * O), lambda i: (i, 0)),
        compiler_params=pltpu.CompilerParams(
            dimension_semantics=("parallel",),             # megacore sharding on v7x
            vmem_limit_bytes=48 * 1024 * 1024),            # headroom for big tiles
        cost_estimate=pl.CostEstimate(
            flops=2 * Bp * (E * H + H * O + E),
            transcendentals=Bp * E,
            bytes_accessed=Bp * 4 + Bp * O * out_bytes + 4 * resident_elems),
    )(t_folded, fmat, phase_f, w1f, b1f, w2f, b2f)

    out = out.reshape(Bp, O)          # row-major bit-identical un-fold (free)
    return out[:B] if Bp != B else out


def _reference(temp, w1, b1, w2, b2, embedding_dim):
    half = embedding_dim // 2
    freqs = jnp.exp(jnp.arange(half, dtype=jnp.float32)
                    * (-math.log(10000.0) / (half - 1)))
    arg = temp.astype(jnp.float32)[:, None] * freqs[None, :]
    emb = jnp.concatenate([jnp.sin(arg), jnp.cos(arg)], axis=1)
    h = jnp.dot(emb, w1, precision=jax.lax.Precision.HIGHEST) + b1
    h = jnp.where(h >= 0, h, 0.2 * h)
    return jnp.dot(h, w2, precision=jax.lax.Precision.HIGHEST) + b2


if __name__ == "__main__":
    embedding_dim = 32
    hidden_dim = 64
    output_dim = 32

    key = jax.random.PRNGKey(0)
    k_t, k_t2, k_w1, k_b1, k_w2, k_b2 = jax.random.split(key, 6)

    # Deterministic parameter init mimicking nn.Linear (uniform +-1/sqrt(fan_in)),
    # stored directly in [in, out] layout.
    lim1 = 1.0 / math.sqrt(embedding_dim)
    lim2 = 1.0 / math.sqrt(hidden_dim)
    w1 = jax.random.uniform(k_w1, (embedding_dim, hidden_dim),
                            minval=-lim1, maxval=lim1, dtype=jnp.float32)
    b1 = jax.random.uniform(k_b1, (hidden_dim,),
                            minval=-lim1, maxval=lim1, dtype=jnp.float32)
    w2 = jax.random.uniform(k_w2, (hidden_dim, output_dim),
                            minval=-lim2, maxval=lim2, dtype=jnp.float32)
    b2 = jax.random.uniform(k_b2, (output_dim,),
                            minval=-lim2, maxval=lim2, dtype=jnp.float32)

    # Case 1: small batch, f32 output, single grid step.
    B = 8
    temp = jax.random.uniform(k_t, (B,), dtype=jnp.float32)   # continuous t in [0, 1)
    out = jax.block_until_ready(
        timestep_embedding(temp, w1, b1, w2, b2, embedding_dim))
    ref = _reference(temp, w1, b1, w2, b2, embedding_dim)
    assert out.shape == (B, output_dim)
    assert out.dtype == jnp.float32
    assert jnp.allclose(out, ref, atol=1e-3, rtol=1e-3), "fp32 mismatch vs reference"

    # Case 2: larger batch -> padded, 2-step grid (megacore path) with bf16 output
    # writeback (halves HBM writeback bytes); tolerance loosened for bf16 rounding.
    B2 = 200
    temp2 = jax.random.uniform(k_t2, (B2,), dtype=jnp.float32)
    out2 = jax.block_until_ready(
        timestep_embedding(temp2, w1, b1, w2, b2, embedding_dim,
                           out_dtype=jnp.bfloat16))
    ref2 = _reference(temp2, w1, b1, w2, b2, embedding_dim)
    assert out2.shape == (B2, output_dim)
    assert out2.dtype == jnp.bfloat16
    assert jnp.allclose(out2.astype(jnp.float32), ref2, atol=3e-2, rtol=3e-2), \
        "bf16-out mismatch vs reference"

    print("KERNEL_OK")
</pallas_src>

<mosaic_0001>
module attributes {stable_mosaic.version = 11 : i64} {
  func.func @_timestep_embedding_kernel(%arg0: i32, %arg1: memref<8x4xf32, #tpu.memory_space<vmem>>, %arg2: memref<4x128xf32, #tpu.memory_space<vmem>>, %arg3: memref<1x128xf32, #tpu.memory_space<vmem>>, %arg4: memref<128x256xf32, #tpu.memory_space<vmem>>, %arg5: memref<1x256xf32, #tpu.memory_space<vmem>>, %arg6: memref<256x128xf32, #tpu.memory_space<vmem>>, %arg7: memref<1x128xf32, #tpu.memory_space<vmem>>, %arg8: memref<8x128xf32, #tpu.memory_space<vmem>>) attributes {dimension_semantics = [#tpu.dimension_semantics<parallel>], iteration_bounds = array<i64: 1>, scalar_prefetch = 0 : i64, scratch_operands = 0 : i64, tpu.core_type = #tpu.core_type<tc>, window_params = [{transform_indices = @transform_0, window_bounds = array<i64: 8, 4>}, {pipeline_mode = #tpu.pipeline_mode<synchronous>, transform_indices = @transform_1, window_bounds = array<i64: 4, 128>}, {pipeline_mode = #tpu.pipeline_mode<synchronous>, transform_indices = @transform_2, window_bounds = array<i64: 1, 128>}, {pipeline_mode = #tpu.pipeline_mode<synchronous>, transform_indices = @transform_3, window_bounds = array<i64: 128, 256>}, {pipeline_mode = #tpu.pipeline_mode<synchronous>, transform_indices = @transform_4, window_bounds = array<i64: 1, 256>}, {pipeline_mode = #tpu.pipeline_mode<synchronous>, transform_indices = @transform_5, window_bounds = array<i64: 256, 128>}, {pipeline_mode = #tpu.pipeline_mode<synchronous>, transform_indices = @transform_6, window_bounds = array<i64: 1, 128>}, {transform_indices = @transform_7, window_bounds = array<i64: 8, 128>}]} {
    %c0 = arith.constant 0 : index
    %c0_0 = arith.constant 0 : index
    %0 = vector.load %arg1[%c0, %c0_0] : memref<8x4xf32, #tpu.memory_space<vmem>>, vector<8x4xf32>
    %c0_1 = arith.constant 0 : index
    %c0_2 = arith.constant 0 : index
    %1 = vector.load %arg2[%c0_1, %c0_2] : memref<4x128xf32, #tpu.memory_space<vmem>>, vector<4x128xf32>
    %cst = arith.constant dense<0.000000e+00> : vector<8x128xf32>
    %2 = tpu.matmul %0, %1, %cst {dimension_numbers = #tpu.dot_dimension_numbers<[1], [0], [0], [1], [0, 0, 1, 1], [], []>} : vector<8x4xf32>, vector<4x128xf32>, vector<8x128xf32> -> vector<8x128xf32>
    %c0_3 = arith.constant 0 : index
    %c0_4 = arith.constant 0 : index
    %3 = vector.load %arg3[%c0_3, %c0_4] : memref<1x128xf32, #tpu.memory_space<vmem>>, vector<1x128xf32>
    %4 = vector.broadcast %3 : vector<1x128xf32> to vector<8x128xf32>
    %5 = arith.addf %2, %4 : vector<8x128xf32>
    %6 = math.sin %5 : vector<8x128xf32>
    %c0_5 = arith.constant 0 : index
    %c0_6 = arith.constant 0 : index
    %7 = vector.load %arg4[%c0_5, %c0_6] : memref<128x256xf32, #tpu.memory_space<vmem>>, vector<128x256xf32>
    %cst_7 = arith.constant dense<0.000000e+00> : vector<8x256xf32>
    %8 = tpu.matmul %6, %7, %cst_7 {dimension_numbers = #tpu.dot_dimension_numbers<[1], [0], [0], [1], [0, 0, 1, 1], [], []>} : vector<8x128xf32>, vector<128x256xf32>, vector<8x256xf32> -> vector<8x256xf32>
    %c0_8 = arith.constant 0 : index
    %c0_9 = arith.constant 0 : index
    %9 = vector.load %arg5[%c0_8, %c0_9] : memref<1x256xf32, #tpu.memory_space<vmem>>, vector<1x256xf32>
    %10 = vector.broadcast %9 : vector<1x256xf32> to vector<8x256xf32>
    %11 = arith.addf %8, %10 : vector<8x256xf32>
    %cst_10 = arith.constant 0.000000e+00 : f32
    %12 = vector.broadcast %cst_10 : f32 to vector<8x256xf32>
    %13 = arith.cmpf oge, %11, %12 : vector<8x256xf32>
    %cst_11 = arith.constant 2.000000e-01 : f32
    %14 = vector.broadcast %cst_11 : f32 to vector<8x256xf32>
    %15 = arith.mulf %14, %11 : vector<8x256xf32>
    %16 = arith.select %13, %11, %15 : vector<8x256xi1>, vector<8x256xf32>
    %c0_12 = arith.constant 0 : index
    %c0_13 = arith.constant 0 : index
    %17 = vector.load %arg6[%c0_12, %c0_13] : memref<256x128xf32, #tpu.memory_space<vmem>>, vector<256x128xf32>
    %cst_14 = arith.constant dense<0.000000e+00> : vector<8x128xf32>
    %18 = tpu.matmul %16, %17, %cst_14 {dimension_numbers = #tpu.dot_dimension_numbers<[1], [0], [0], [1], [0, 0, 1, 1], [], []>} : vector<8x256xf32>, vector<256x128xf32>, vector<8x128xf32> -> vector<8x128xf32>
    %c0_15 = arith.constant 0 : index
    %c0_16 = arith.constant 0 : index
    %19 = vector.load %arg7[%c0_15, %c0_16] : memref<1x128xf32, #tpu.memory_space<vmem>>, vector<1x128xf32>
    %20 = vector.broadcast %19 : vector<1x128xf32> to vector<8x128xf32>
    %21 = arith.addf %18, %20 : vector<8x128xf32>
    %c0_17 = arith.constant 0 : index
    %c0_18 = arith.constant 0 : index
    %22 = vector.load %arg8[%c0_17, %c0_18] : memref<8x128xf32, #tpu.memory_space<vmem>>, vector<8x128xf32>
    tpu.vector_store %arg8[%c0_17, %c0_18], %21 {strides = array<i32>} : memref<8x128xf32, #tpu.memory_space<vmem>>, vector<8x128xf32>,
    return
  }
  func.func @transform_0(%arg0: i32) -> (i32, i32) {
    %c0_i32 = arith.constant 0 : i32
    %c0_i32_0 = arith.constant 0 : i32
    return %arg0, %c0_i32 : i32, i32
  }
  func.func @transform_1(%arg0: i32) -> (i32, i32) {
    %c0_i32 = arith.constant 0 : i32
    %c0_i32_0 = arith.constant 0 : i32
    %c0_i32_1 = arith.constant 0 : i32
    return %c0_i32, %c0_i32_0 : i32, i32
  }
  func.func @transform_2(%arg0: i32) -> (i32, i32) {
    %c0_i32 = arith.constant 0 : i32
    %c0_i32_0 = arith.constant 0 : i32
    %c0_i32_1 = arith.constant 0 : i32
    return %c0_i32, %c0_i32_0 : i32, i32
  }
  func.func @transform_3(%arg0: i32) -> (i32, i32) {
    %c0_i32 = arith.constant 0 : i32
    %c0_i32_0 = arith.constant 0 : i32
    %c0_i32_1 = arith.constant 0 : i32
    return %c0_i32, %c0_i32_0 : i32, i32
  }
  func.func @transform_4(%arg0: i32) -> (i32, i32) {
    %c0_i32 = arith.constant 0 : i32
    %c0_i32_0 = arith.constant 0 : i32
    %c0_i32_1 = arith.constant 0 : i32
    return %c0_i32, %c0_i32_0 : i32, i32
  }
  func.func @transform_5(%arg0: i32) -> (i32, i32) {
    %c0_i32 = arith.constant 0 : i32
    %c0_i32_0 = arith.constant 0 : i32
    %c0_i32_1 = arith.constant 0 : i32
    return %c0_i32, %c0_i32_0 : i32, i32
  }
  func.func @transform_6(%arg0: i32) -> (i32, i32) {
    %c0_i32 = arith.constant 0 : i32
    %c0_i32_0 = arith.constant 0 : i32
    %c0_i32_1 = arith.constant 0 : i32
    return %c0_i32, %c0_i32_0 : i32, i32
  }
  func.func @transform_7(%arg0: i32) -> (i32, i32) {
    %c0_i32 = arith.constant 0 : i32
    %c0_i32_0 = arith.constant 0 : i32
    return %arg0, %c0_i32 : i32, i32
  }
}

</mosaic_0001>

<llo_original>
// kernel: tpu_custom_call.1
$region0: #{tpu_custom_call.1}
  #allocation0 [shape = 'u32[]', space=smem, size = 0x4, offset = 0x4, fixed_abs, tag = 'smem constant byte address 0x4 - core index']
  #allocation1 [shape = 'u32[144,128]{1,0:T(1,128)}', space=vmem, size = 0x12000, scoped, tag = 'internal scratch']
  %s0 = inlined_call_operand.vmem [shape: f32[8,4], index: 0, kind: input, shape index: {}]
  %s1 = inlined_call_operand.vmem [shape: f32[4,128], index: 1, kind: input, shape index: {}]
  %s2 = inlined_call_operand.vmem [shape: f32[1,128], index: 2, kind: input, shape index: {}]
  %s3 = inlined_call_operand.hbm [shape: f32[128,256], index: 3, kind: input, shape index: {}]
  %s4 = inlined_call_operand.vmem [shape: f32[1,256], index: 4, kind: input, shape index: {}]
  %s5 = inlined_call_operand.hbm [shape: f32[256,128], index: 5, kind: input, shape index: {}]
  %s6 = inlined_call_operand.vmem [shape: f32[1,128], index: 6, kind: input, shape index: {}]
  %s7 = inlined_call_operand.hbm [shape: f32[8,128], index: 7, kind: output, shape index: {}]
  %s8 = sld [smem:[#allocation0]]
  $region46: #{tpu_custom_call.1} parent=0
    _
  %s10 = ssub.s32 1, %s8
  %s11 = scalar_select 0, %s10, %s8
  $region1: #{tpu_custom_call.1} parent=0
    #allocation2 [shape = 'u8[131072]{0}', space=vmem, size = 0x20000, scoped, tag = 'input window, operand 3, single buffered']
    #allocation3 [shape = 's32[1]{0}', space=sflag, size = 0x4, scoped, tag = 'scoped memory for tpu_custom_call.1']
    #allocation4 [shape = 's32[1]{0}', space=sflag, size = 0x4, scoped, tag = 'scoped memory for tpu_custom_call.1']
    #allocation5 [shape = 'u8[131072]{0}', space=vmem, size = 0x20000, scoped, tag = 'input window, operand 5, single buffered']
    #allocation6 [shape = 's32[1]{0}', space=sflag, size = 0x4, scoped, tag = 'scoped memory for tpu_custom_call.1']
    #allocation7 [shape = 'u8[4096]{0}', space=vmem, size = 0x1000, scoped, tag = 'output window, operand 0, single buffered']
    %12 = vsyncpa [#allocation3], 0
    %13 = vsyncpa [#allocation6], 0
    %14 = vsyncpa [#allocation4], 0
    // Predicated region
    $region2: #{tpu_custom_call.1} parent=1 // pred_check
      _
    $region3: #{tpu_custom_call.1} parent=1 // pred_check_branch
      %16 = sbr.rel (0) target = $region5
    $region4: #{tpu_custom_call.1} parent=1 // pred_region
      _
    $region5: #{tpu_custom_call.1} parent=1 // pred_fallthru
      _
    // Predicated region
    $region6: #{tpu_custom_call.1} parent=1 // pred_check
      _
    $region7: #{tpu_custom_call.1} parent=1 // pred_check_branch
      %18 = sbr.rel (0) target = $region9
    $region8: #{tpu_custom_call.1} parent=1 // pred_region
      _
    $region9: #{tpu_custom_call.1} parent=1 // pred_fallthru
      _
    // Predicated region
    $region10: #{tpu_custom_call.1} parent=1 // pred_check
      _
    $region11: #{tpu_custom_call.1} parent=1 // pred_check_branch
      %20 = sbr.rel (0) target = $region13
    $region12: #{tpu_custom_call.1} parent=1 // pred_region
      _
    $region13: #{tpu_custom_call.1} parent=1 // pred_fallthru
      _
    // Predicated region
    $region14: #{tpu_custom_call.1} parent=1 // pred_check
      _
    $region15: #{tpu_custom_call.1} parent=1 // pred_check_branch
      %22 = sbr.rel (0) target = $region17
    $region16: #{tpu_custom_call.1} parent=1 // pred_region
      %s24 = ssub.s32 4096, 4096
      %25 = vsyncadd [#allocation3], %s24
      %s26 = sshll.u32 [#allocation2], 4
      %s27 = int_to_ptr.vmem [resolvable:$true] %s26
      %32 = dma.hbm_to_vmem [thread:$0]  %s3, 4096, %s27, [#allocation3], 256, 256, 16
    $region17: #{tpu_custom_call.1} parent=1 // pred_fallthru
      _
    // Predicated region
    $region18: #{tpu_custom_call.1} parent=1 // pred_check
      _
    $region19: #{tpu_custom_call.1} parent=1 // pred_check_branch
      %34 = sbr.rel (0) target = $region21
    $region20: #{tpu_custom_call.1} parent=1 // pred_region
      _
    $region21: #{tpu_custom_call.1} parent=1 // pred_fallthru
      _
    // Predicated region
    $region22: #{tpu_custom_call.1} parent=1 // pred_check
      _
    $region23: #{tpu_custom_call.1} parent=1 // pred_check_branch
      %36 = sbr.rel (0) target = $region25
    $region24: #{tpu_custom_call.1} parent=1 // pred_region
      %s38 = ssub.s32 4096, 4096
      %39 = vsyncadd [#allocation6], %s38
      %s40 = sshll.u32 [#allocation5], 4
      %s41 = int_to_ptr.vmem [resolvable:$true] %s40
      %46 = dma.hbm_to_vmem [thread:$0]  %s5, 4096, %s41, [#allocation6], 128, 128, 8
    $region25: #{tpu_custom_call.1} parent=1 // pred_fallthru
      _
    // Predicated region
    $region26: #{tpu_custom_call.1} parent=1 // pred_check
      _
    $region27: #{tpu_custom_call.1} parent=1 // pred_check_branch
      %48 = sbr.rel (0) target = $region29
    $region28: #{tpu_custom_call.1} parent=1 // pred_region
      _
    $region29: #{tpu_custom_call.1} parent=1 // pred_fallthru
      _
    // Predicated region
    $region30: #{tpu_custom_call.1} parent=1 // pred_check
      _
    $region31: #{tpu_custom_call.1} parent=1 // pred_check_branch
      %50 = sbr.rel (0) target = $region33
    $region32: #{tpu_custom_call.1} parent=1 // pred_region
      %51 = dma.done [#allocation3], 4096
    $region33: #{tpu_custom_call.1} parent=1 // pred_fallthru
      _
    // Predicated region
    $region34: #{tpu_custom_call.1} parent=1 // pred_check
      _
    $region35: #{tpu_custom_call.1} parent=1 // pred_check_branch
      %53 = sbr.rel (0) target = $region37
    $region36: #{tpu_custom_call.1} parent=1 // pred_region
      %54 = dma.done [#allocation6], 4096
    $region37: #{tpu_custom_call.1} parent=1 // pred_fallthru
      _
    %v55 = vld [vmem:[%s0] sm:$0xff]
    %v56 = vld [vmem:[%s1] sm:$0xf]
    %v57 = vld [vmem:[%s2] sm:$0x1]
    %v59 = vlaneseq
    %v60 = vshrl.u32 %v59, 7
    %v61 = vsub.s32 0, %v60
    %v62 = vrot.slane %v57, %v61
    %vm64 = vcmask 31744
    %v66 = vsel %vm64, %v55, 0
    %vm68 = vcmask 1043456
    %v70 = vsel %vm68, %v56, 0
    %72 = vmatprep.subr.mxu0 0.0
    %73 = vmatpush1.msra.mxu0 %v70
    %74 = vmatprep.subr.mxu0 0.0
    %75 = vmatpush1.msra.mxu0 0.0
    %76 = vmatprep.subr.mxu0 0.0
    %77 = vmatpush1.msra.mxu0 0.0
    %78 = vmatprep.subr.mxu0 0.0
    %79 = vmatpush1.msra.mxu0 0.0
    %80 = vmatprep.subr.mxu0 0.0
    %81 = vmatpush1.msra.mxu0 0.0
    %82 = vmatprep.subr.mxu0 0.0
    %83 = vmatpush1.msra.mxu0 0.0
    %84 = vmatprep.subr.mxu0 0.0
    %85 = vmatpush1.msra.mxu0 0.0
    %86 = vmatprep.subr.mxu0 0.0
    %87 = vmatpush1.msra.mxu0 0.0
    %88 = vmatprep.subr.mxu0 0.0
    %89 = vmatpush1.msra.mxu0 0.0
    %90 = vmatprep.subr.mxu0 0.0
    %91 = vmatpush1.msra.mxu0 0.0
    %92 = vmatprep.subr.mxu0 0.0
    %93 = vmatpush1.msra.mxu0 0.0
    %94 = vmatprep.subr.mxu0 0.0
    %95 = vmatpush1.msra.mxu0 0.0
    %96 = vmatprep.subr.mxu0 0.0
    %97 = vmatpush1.msra.mxu0 0.0
    %98 = vmatprep.subr.mxu0 0.0
    %99 = vmatpush1.msra.mxu0 0.0
    %100 = vmatprep.subr.mxu0 0.0
    %101 = vmatpush1.msra.mxu0 0.0
    %102 = vmatprep.subr.mxu0 0.0
    %103 = vmatpush1.msra.mxu0 0.0
    %104 = vmatprep.subr.mxu0 0.0
    %105 = vmatpush1.msra.mxu0 0.0
    %106 = vmatprep.subr.mxu0 0.0
    %107 = vmatpush1.msra.mxu0 0.0
    %108 = vmatprep.subr.mxu0 0.0
    %109 = vmatpush1.msra.mxu0 0.0
    %110 = vmatprep.subr.mxu0 0.0
    %111 = vmatpush1.msra.mxu0 0.0
    %112 = vmatprep.subr.mxu0 0.0
    %113 = vmatpush1.msra.mxu0 0.0
    %114 = vmatprep.subr.mxu0 0.0
    %115 = vmatpush1.msra.mxu0 0.0
    %116 = vmatprep.subr.mxu0 0.0
    %117 = vmatpush1.msra.mxu0 0.0
    %118 = vmatprep.subr.mxu0 0.0
    %119 = vmatpush1.msra.mxu0 0.0
    %120 = vmatprep.subr.mxu0 0.0
    %121 = vmatpush1.msra.mxu0 0.0
    %122 = vmatprep.subr.mxu0 0.0
    %123 = vmatpush1.msra.mxu0 0.0
    %124 = vmatprep.subr.mxu0 0.0
    %125 = vmatpush1.msra.mxu0 0.0
    %126 = vmatprep.subr.mxu0 0.0
    %127 = vmatpush1.msra.mxu0 0.0
    %128 = vmatprep.subr.mxu0 0.0
    %129 = vmatpush1.msra.mxu0 0.0
    %130 = vmatprep.subr.mxu0 0.0
    %131 = vmatpush1.msra.mxu0 0.0
    %132 = vmatprep.subr.mxu0 0.0
    %133 = vmatpush1.msra.mxu0 0.0
    %134 = vmatprep.subr.mxu0 0.0
    %135 = vmatpush1.msra.mxu0 0.0
    %136 = vmatprep.mubr.f32.mxu0 0.0
    %137 = vmatmul.mubr.f32.gmra.mrb[0].mxu0 %v66
    %v138 = vpop.f32.mrb[0].mxu0
    %v139 = vadd.f32 %v62, %v138
    %v140 = vpop.f32.mrb[0].mxu0
    %141 = vdwg.mxu0
    %v142 = vand.u32 2147483647, %v139
    %vm143 = vcmp.le.f32.partialorder %v142, 0.7853982
    %vm144 = vcmp.lt.s32.totalorder %v139, 0
    %v145 = vand.u32 %v139, 2139095040
    %v146 = vshrl.u32 %v145, 23
    %v147 = vsub.s32 %v146, 127
    %v148 = vand.u32 2147483647, %v139
    %v149 = vand.u32 %v148, 8388607
    %v150 = vor.u32 %v149, 8388608
    %v151 = vsub.s32 0, %v150
    %v152 = vadd.s32 %v147, 1
    %vm153 = vcmp.gt.s32.totalorder %v152, 0
    %v154 = vsel %vm153, %v152, 0
    %v155 = vshrl.u32 %v154, 5
    %v156 = vand.u32 %v154, 31
    %v157 = vsub.s32 32, %v156
    %v158 = vshrl.u32 683565275, %v157
    %v159 = vshll.u32 683565275, %v156
    %v160 = vshrl.u32 2475754826, %v157
    %v161 = vor.u32 %v159, %v160
    %v162 = vshll.u32 2475754826, %v156
    %v163 = vshrl.u32 2131351028, %v157
    %v164 = vor.u32 %v162, %v163
    %v165 = vshll.u32 2131351028, %v156
    %v166 = vshrl.u32 2102212464, %v157
    %v167 = vor.u32 %v165, %v166
    %v168 = vshll.u32 2102212464, %v156
    %v169 = vshrl.u32 920167782, %v157
    %v170 = vor.u32 %v168, %v169
    %v171 = vshll.u32 920167782, %v156
    %v172 = vshrl.u32 1326507024, %v157
    %v173 = vor.u32 %v171, %v172
    %vm174 = vcmp.lt.s32.totalorder %v155, 1
    %vm175 = vcmp.lt.s32.totalorder %v155, 2
    %vm176 = vcmp.lt.s32.totalorder %v155, 3
    %vm177 = vcmp.lt.s32.totalorder %v155, 4
    %v178 = vsel %vm174, %v158, %v161
    %v179 = vsel %vm177, %v167, 2102212464
    %v180 = vsel %vm176, %v164, %v179
    %v181 = vsel %vm175, %v178, %v180
    %v182 = vsel %vm174, %v161, %v164
    %v183 = vsel %vm177, %v170, 920167782
    %v184 = vsel %vm176, %v167, %v183
    %v185 = vsel %vm175, %v182, %v184
    %v186 = vsel %vm174, %v164, %v167
    %v187 = vsel %vm177, %v173, 1326507024
    %v188 = vsel %vm176, %v170, %v187
    %v189 = vsel %vm175, %v186, %v188
    %v190 = vshll.u32 %v150, 8
    %v191 = vmul.u32.u64.compose %v190, %v189
    %v192 = vextract.low.u32 %v191
    %v193 = vextract.high.u32 %v191
    %v194 = vmul.u32.u64.compose %v190, %v185
    %v195 = vextract.low.u32 %v194
    %v196 = vextract.high.u32 %v194
    %v197 = vmul.u32 %v190, %v181
    %v198 = vadd.s32 %v193, %v195
    %vm199 = vc.u32 %v193, %v195
    %v200 = vadd.s32 %v196, 1
    %v201 = vsel %vm199, %v200, %v196
    %v202 = vadd.s32 %v197, %v201
    %v203 = vadd.s32 %v202, 536870912
    %v204 = vshrl.u32 %v203, 30
    %v205 = vshll.u32 %v204, 30
    %v206 = vsub.s32 %v202, %v205
    %vm207 = vcmp.lt.s32.totalorder %v206, 0
    %v208 = vsub.s32 0, %v206
    %v209 = vsel %vm207, %v208, %v206
    %v210 = vclz %v209
    %v211 = vsub.s32 %v210, 2
    %vm212 = vcmp.gt.s32.totalorder 0, %v211
    %v213 = vsel %vm212, 0, %v211
    %v214 = vsub.s32 32, %v213
    %v215 = vshll.u32 %v206, %v213
    %v216 = vshrl.u32 %v198, %v214
    %v217 = vor.u32 %v215, %v216
    %v218 = vsub.s32 4294967266, %v213
    %v219 = vadd.s32 %v218, 127
    %v220 = vshll.u32 %v219, 23
    %v221 = vor.u32 4788187, %v220
    %v222 = vand.u32 2147483647, %v221
    %v224 = vcvt.s32.f32 %v217
    %v225 = vmul.f32 %v224, %v222
    %v226 = vxor.u32 %v225, 2147483648
    %v227 = vsel %vm144, %v226, %v225
    %v228 = vsub.s32 4, %v204
    %v229 = vsel %vm144, %v228, %v204
    %v230 = vsel %vm143, %v139, %v227
    %v231 = vsel %vm143, 0, %v229
    %v232 = vcosq.f32.pop %v230
    %v233 = vsinq.f32.pop %v230
    %vm234 = vweird.f32 %v139
    %v235 = vadd.s32 %v231, 3
    %v236 = vand.u32 %v235, 3
    %vm237 = vcmp.lt.s32.totalorder %v236, 2
    %vm238 = vcmp.eq.s32.totalorder %v236, 0
    %v239 = vxor.u32 %v233, 2147483648
    %v240 = vsel %vm238, %v232, %v239
    %vm241 = vcmp.eq.s32.totalorder %v236, 2
    %v242 = vxor.u32 %v232, 2147483648
    %v243 = vsel %vm241, %v242, %v233
    %v244 = vsel %vm237, %v240, %v243
    %v245 = vsel %vm234, nan, %v244
    %v246 = vld [vmem:[#allocation2] sm:$0xff]
    %v247 = vld [vmem:[#allocation2 + $0x8] sm:$0xff]
    %v248 = vld [vmem:[#allocation2 + $0x10] sm:$0xff]
    %v249 = vld [vmem:[#allocation2 + $0x18] sm:$0xff]
    %v250 = vld [vmem:[#allocation2 + $0x20] sm:$0xff]
    %v251 = vld [vmem:[#allocation2 + $0x28] sm:$0xff]
    %v252 = vld [vmem:[#allocation2 + $0x30] sm:$0xff]
    %v253 = vld [vmem:[#allocation2 + $0x38] sm:$0xff]
    %v254 = vld [vmem:[#allocation2 + $0x40] sm:$0xff]
    %v255 = vld [vmem:[#allocation2 + $0x48] sm:$0xff]
    %v256 = vld [vmem:[#allocation2 + $0x50] sm:$0xff]
    %v257 = vld [vmem:[#allocation2 + $0x58] sm:$0xff]
    %v258 = vld [vmem:[#allocation2 + $0x60] sm:$0xff]
    %v259 = vld [vmem:[#allocation2 + $0x68] sm:$0xff]
    %v260 = vld [vmem:[#allocation2 + $0x70] sm:$0xff]
    %v261 = vld [vmem:[#allocation2 + $0x78] sm:$0xff]
    %v262 = vld [vmem:[#allocation2 + $0x80] sm:$0xff]
    %v263 = vld [vmem:[#allocation2 + $0x88] sm:$0xff]
    %v264 = vld [vmem:[#allocation2 + $0x90] sm:$0xff]
    %v265 = vld [vmem:[#allocation2 + $0x98] sm:$0xff]
    %v266 = vld [vmem:[#allocation2 + $0xa0] sm:$0xff]
    %v267 = vld [vmem:[#allocation2 + $0xa8] sm:$0xff]
    %v268 = vld [vmem:[#allocation2 + $0xb0] sm:$0xff]
    %v269 = vld [vmem:[#allocation2 + $0xb8] sm:$0xff]
    %v270 = vld [vmem:[#allocation2 + $0xc0] sm:$0xff]
    %v271 = vld [vmem:[#allocation2 + $0xc8] sm:$0xff]
    %v272 = vld [vmem:[#allocation2 + $0xd0] sm:$0xff]
    %v273 = vld [vmem:[#allocation2 + $0xd8] sm:$0xff]
    %v274 = vld [vmem:[#allocation2 + $0xe0] sm:$0xff]
    %v275 = vld [vmem:[#allocation2 + $0xe8] sm:$0xff]
    %v276 = vld [vmem:[#allocation2 + $0xf0] sm:$0xff]
    %v277 = vld [vmem:[#allocation2 + $0xf8] sm:$0xff]
    %v278 = vld [vmem:[%s4] sm:$0x3]
    %v280 = vlaneseq
    %v281 = vshrl.u32 %v280, 7
    %v282 = vsub.s32 0, %v281
    %v283 = vrot.slane %v278, %v282
    %v284 = vlaneseq
    %v285 = vshrl.u32 %v284, 7
    %v286 = vsub.s32 1, %v285
    %v287 = vrot.slane %v278, %v286
    %290 = vmatprep.subr.mxu0 %v247
    %291 = vmatpush1.msra.mxu0 %v246
    %292 = vmatprep.subr.mxu0 %v249
    %293 = vmatpush1.msra.mxu0 %v248
    %294 = vmatprep.subr.mxu0 %v251
    %295 = vmatpush1.msra.mxu0 %v250
    %296 = vmatprep.subr.mxu0 %v253
    %297 = vmatpush1.msra.mxu0 %v252
    %298 = vmatprep.subr.mxu0 %v255
    %299 = vmatpush1.msra.mxu0 %v254
    %300 = vmatprep.subr.mxu0 %v257
    %301 = vmatpush1.msra.mxu0 %v256
    %302 = vmatprep.subr.mxu0 %v259
    %303 = vmatpush1.msra.mxu0 %v258
    %304 = vmatprep.subr.mxu0 %v261
    %305 = vmatpush1.msra.mxu0 %v260
    %306 = vmatprep.subr.mxu0 %v263
    %307 = vmatpush1.msra.mxu0 %v262
    %308 = vmatprep.subr.mxu0 %v265
    %309 = vmatpush1.msra.mxu0 %v264
    %310 = vmatprep.subr.mxu0 %v267
    %311 = vmatpush1.msra.mxu0 %v266
    %312 = vmatprep.subr.mxu0 %v269
    %313 = vmatpush1.msra.mxu0 %v268
    %314 = vmatprep.subr.mxu0 %v271
    %315 = vmatpush1.msra.mxu0 %v270
    %316 = vmatprep.subr.mxu0 %v273
    %317 = vmatpush1.msra.mxu0 %v272
    %318 = vmatprep.subr.mxu0 %v275
    %319 = vmatpush1.msra.mxu0 %v274
    %320 = vmatprep.subr.mxu0 %v277
    %321 = vmatpush1.msra.mxu0 %v276
    %322 = vmatprep.subr.mxu0 0.0
    %323 = vmatpush1.msra.mxu0 0.0
    %324 = vmatprep.subr.mxu0 0.0
    %325 = vmatpush1.msra.mxu0 0.0
    %326 = vmatprep.subr.mxu0 0.0
    %327 = vmatpush1.msra.mxu0 0.0
    %328 = vmatprep.subr.mxu0 0.0
    %329 = vmatpush1.msra.mxu0 0.0
    %330 = vmatprep.subr.mxu0 0.0
    %331 = vmatpush1.msra.mxu0 0.0
    %332 = vmatprep.subr.mxu0 0.0
    %333 = vmatpush1.msra.mxu0 0.0
    %334 = vmatprep.subr.mxu0 0.0
    %335 = vmatpush1.msra.mxu0 0.0
    %336 = vmatprep.subr.mxu0 0.0
    %337 = vmatpush1.msra.mxu0 0.0
    %338 = vmatprep.subr.mxu0 0.0
    %339 = vmatpush1.msra.mxu0 0.0
    %340 = vmatprep.subr.mxu0 0.0
    %341 = vmatpush1.msra.mxu0 0.0
    %342 = vmatprep.subr.mxu0 0.0
    %343 = vmatpush1.msra.mxu0 0.0
    %344 = vmatprep.subr.mxu0 0.0
    %345 = vmatpush1.msra.mxu0 0.0
    %346 = vmatprep.subr.mxu0 0.0
    %347 = vmatpush1.msra.mxu0 0.0
    %348 = vmatprep.subr.mxu0 0.0
    %349 = vmatpush1.msra.mxu0 0.0
    %350 = vmatprep.subr.mxu0 0.0
    %351 = vmatpush1.msra.mxu0 0.0
    %352 = vmatprep.subr.mxu0 0.0
    %353 = vmatpush1.msra.mxu0 0.0
    %354 = vmatprep.mubr.f32.mxu0 0.0
    %355 = vmatmul.mubr.f32.gmra.mrb[0].mxu0 %v245
    %v356 = vpop.f32.mrb[0].mxu0
    %v357 = vadd.f32 %v283, %v356
    %v358 = vpop.f32.mrb[0].mxu0
    %v359 = vadd.f32 %v287, %v358
    %360 = vdwg.mxu0
    %vm361 = vcmp.ge.f32.partialorder %v357, 0.0
    %vm362 = vcmp.ge.f32.partialorder %v359, 0.0
    %v363 = vmul.f32 %v357, 0.2
    %v364 = vmul.f32 %v359, 0.2
    %v365 = vsel %vm361, %v357, %v363
    %v366 = vsel %vm362, %v359, %v364
    %v367 = vld [vmem:[#allocation5] sm:$0xff]
    %v368 = vld [vmem:[#allocation5 + $0x8] sm:$0xff]
    %v369 = vld [vmem:[#allocation5 + $0x10] sm:$0xff]
    %v370 = vld [vmem:[#allocation5 + $0x18] sm:$0xff]
    %v371 = vld [vmem:[#allocation5 + $0x20] sm:$0xff]
    %v372 = vld [vmem:[#allocation5 + $0x28] sm:$0xff]
    %v373 = vld [vmem:[#allocation5 + $0x30] sm:$0xff]
    %v374 = vld [vmem:[#allocation5 + $0x38] sm:$0xff]
    %v375 = vld [vmem:[#allocation5 + $0x40] sm:$0xff]
    %v376 = vld [vmem:[#allocation5 + $0x48] sm:$0xff]
    %v377 = vld [vmem:[#allocation5 + $0x50] sm:$0xff]
    %v378 = vld [vmem:[#allocation5 + $0x58] sm:$0xff]
    %v379 = vld [vmem:[#allocation5 + $0x60] sm:$0xff]
    %v380 = vld [vmem:[#allocation5 + $0x68] sm:$0xff]
    %v381 = vld [vmem:[#allocation5 + $0x70] sm:$0xff]
    %v382 = vld [vmem:[#allocation5 + $0x78] sm:$0xff]
    %v383 = vld [vmem:[#allocation5 + $0x80] sm:$0xff]
    %v384 = vld [vmem:[#allocation5 + $0x88] sm:$0xff]
    %v385 = vld [vmem:[#allocation5 + $0x90] sm:$0xff]
    %v386 = vld [vmem:[#allocation5 + $0x98] sm:$0xff]
    %v387 = vld [vmem:[#allocation5 + $0xa0] sm:$0xff]
    %v388 = vld [vmem:[#allocation5 + $0xa8] sm:$0xff]
    %v389 = vld [vmem:[#allocation5 + $0xb0] sm:$0xff]
    %v390 = vld [vmem:[#allocation5 + $0xb8] sm:$0xff]
    %v391 = vld [vmem:[#allocation5 + $0xc0] sm:$0xff]
    %v392 = vld [vmem:[#allocation5 + $0xc8] sm:$0xff]
    %v393 = vld [vmem:[#allocation5 + $0xd0] sm:$0xff]
    %v394 = vld [vmem:[#allocation5 + $0xd8] sm:$0xff]
    %v395 = vld [vmem:[#allocation5 + $0xe0] sm:$0xff]
    %v396 = vld [vmem:[#allocation5 + $0xe8] sm:$0xff]
    %v397 = vld [vmem:[#allocation5 + $0xf0] sm:$0xff]
    %v398 = vld [vmem:[#allocation5 + $0xf8] sm:$0xff]
    %v399 = vld [vmem:[%s6] sm:$0x1]
    %v401 = vlaneseq
    %v402 = vshrl.u32 %v401, 7
    %v403 = vsub.s32 0, %v402
    %v404 = vrot.slane %v399, %v403
    %406 = vmatprep.subr.mxu0 0.0
    %407 = vmatpush1.msra.mxu0 %v367
    %408 = vmatprep.subr.mxu0 0.0
    %409 = vmatpush1.msra.mxu0 %v368
    %410 = vmatprep.subr.mxu0 0.0
    %411 = vmatpush1.msra.mxu0 %v369
    %412 = vmatprep.subr.mxu0 0.0
    %413 = vmatpush1.msra.mxu0 %v370
    %414 = vmatprep.subr.mxu0 0.0
    %415 = vmatpush1.msra.mxu0 %v371
    %416 = vmatprep.subr.mxu0 0.0
    %417 = vmatpush1.msra.mxu0 %v372
    %418 = vmatprep.subr.mxu0 0.0
    %419 = vmatpush1.msra.mxu0 %v373
    %420 = vmatprep.subr.mxu0 0.0
    %421 = vmatpush1.msra.mxu0 %v374
    %422 = vmatprep.subr.mxu0 0.0
    %423 = vmatpush1.msra.mxu0 %v375
    %424 = vmatprep.subr.mxu0 0.0
    %425 = vmatpush1.msra.mxu0 %v376
    %426 = vmatprep.subr.mxu0 0.0
    %427 = vmatpush1.msra.mxu0 %v377
    %428 = vmatprep.subr.mxu0 0.0
    %429 = vmatpush1.msra.mxu0 %v378
    %430 = vmatprep.subr.mxu0 0.0
    %431 = vmatpush1.msra.mxu0 %v379
    %432 = vmatprep.subr.mxu0 0.0
    %433 = vmatpush1.msra.mxu0 %v380
    %434 = vmatprep.subr.mxu0 0.0
    %435 = vmatpush1.msra.mxu0 %v381
    %436 = vmatprep.subr.mxu0 0.0
    %437 = vmatpush1.msra.mxu0 %v382
    %438 = vmatprep.subr.mxu0 0.0
    %439 = vmatpush1.msra.mxu0 %v383
    %440 = vmatprep.subr.mxu0 0.0
    %441 = vmatpush1.msra.mxu0 %v384
    %442 = vmatprep.subr.mxu0 0.0
    %443 = vmatpush1.msra.mxu0 %v385
    %444 = vmatprep.subr.mxu0 0.0
    %445 = vmatpush1.msra.mxu0 %v386
    %446 = vmatprep.subr.mxu0 0.0
    %447 = vmatpush1.msra.mxu0 %v387
    %448 = vmatprep.subr.mxu0 0.0
    %449 = vmatpush1.msra.mxu0 %v388
    %450 = vmatprep.subr.mxu0 0.0
    %451 = vmatpush1.msra.mxu0 %v389
    %452 = vmatprep.subr.mxu0 0.0
    %453 = vmatpush1.msra.mxu0 %v390
    %454 = vmatprep.subr.mxu0 0.0
    %455 = vmatpush1.msra.mxu0 %v391
    %456 = vmatprep.subr.mxu0 0.0
    %457 = vmatpush1.msra.mxu0 %v392
    %458 = vmatprep.subr.mxu0 0.0
    %459 = vmatpush1.msra.mxu0 %v393
    %460 = vmatprep.subr.mxu0 0.0
    %461 = vmatpush1.msra.mxu0 %v394
    %462 = vmatprep.subr.mxu0 0.0
    %463 = vmatpush1.msra.mxu0 %v395
    %464 = vmatprep.subr.mxu0 0.0
    %465 = vmatpush1.msra.mxu0 %v396
    %466 = vmatprep.subr.mxu0 0.0
    %467 = vmatpush1.msra.mxu0 %v397
    %468 = vmatprep.subr.mxu0 0.0
    %469 = vmatpush1.msra.mxu0 %v398
    %470 = vmatprep.mubr.f32.mxu0 %v366
    %471 = vmatmul.mubr.f32.gmra.mrb[0].mxu0 %v365
    %v472 = vpop.f32.mrb[0].mxu0
    %v473 = vadd.f32 %v404, %v472
    %v474 = vpop.f32.mrb[0].mxu0
    %475 = vdwg.mxu0
    %476 = vst [vmem:[#allocation7] sm:$0xff] %v473
    // Predicated region
    $region38: #{tpu_custom_call.1} parent=1 // pred_check
      _
    $region39: #{tpu_custom_call.1} parent=1 // pred_check_branch
      %478 = sbr.rel (0) target = $region41
    $region40: #{tpu_custom_call.1} parent=1 // pred_region
      %s480 = ssub.s32 128, 128
      %481 = vsyncadd [#allocation4], %s480
      %s483 = sshll.u32 [#allocation7], 4
      %s484 = int_to_ptr.vmem [resolvable:$true] %s483
      %486 = dma.vmem_to_hbm [thread:$0]  %s484, 128, %s7, [#allocation4]
    $region41: #{tpu_custom_call.1} parent=1 // pred_fallthru
      _
    // Predicated region
    $region42: #{tpu_custom_call.1} parent=1 // pred_check
      _
    $region43: #{tpu_custom_call.1} parent=1 // pred_check_branch
      %488 = sbr.rel (0) target = $region45
    $region44: #{tpu_custom_call.1} parent=1 // pred_region
      %489 = dma.done [#allocation4], 128
    $region45: #{tpu_custom_call.1} parent=1 // pred_fallthru
      _
    %490 = vsyncpa [#allocation3], 1
    %491 = vsyncpa [#allocation6], 1
    %492 = vsyncpa [#allocation4], 1

</llo_original>
